<compile_context>
chip_gen: v7x
topology: tpu7x:2x2x1
jax: 0.10.0
libtpu: 0.0.40
codegen_flags: <defaults>
</compile_context>

<pallas_src>
import jax
import jax.numpy as jnp
from jax.experimental import pallas as pl
from jax.experimental.pallas import tpu as pltpu

MEAN = 0.0
SCALE = 0.3
CLIP = True
P = 0.5

_INV_2POW24 = 1.0 / float(1 << 24)


def _noise_kernel(seed_ref, x_ref, o_ref):
    """out = clip(x + (N(0,1)*SCALE + MEAN), 0, 1) on one (blk_r, W) tile."""
    x = x_ref[...]
    rows, cols = x_ref.shape

    # ---- per-element counter: global linear index (unique across the grid) --
    r = jax.lax.broadcasted_iota(jnp.int32, (rows, cols), 0)
    c = jax.lax.broadcasted_iota(jnp.int32, (rows, cols), 1)
    idx = pl.program_id(0) * (rows * cols) + r * cols + c  # int32, wraps >2^31

    # ---- counter-based hash -> uniform in (0, 1) (murmur3 fmix32 finalizer) -
    seed = seed_ref[0].astype(jnp.uint32)
    h = idx.astype(jnp.uint32) * jnp.uint32(0x9E3779B1) + seed
    h = h ^ (h >> 16)
    h = h * jnp.uint32(0x85EBCA6B)
    h = h ^ (h >> 13)
    h = h * jnp.uint32(0xC2B2AE35)
    h = h ^ (h >> 16)
    # 24 high-ish bits -> (0, 1), never exactly 0 or 1.
    u = ((h >> 8).astype(jnp.int32).astype(jnp.float32) + 0.5) * _INV_2POW24

    # ---- uniform -> standard normal via inverse CDF (A&S 26.2.23) -----------
    p = jnp.minimum(u, 1.0 - u)            # (0, 0.5]
    t = jnp.sqrt(-2.0 * jnp.log(p))        # EUP: log + sqrt only (no sin/cos)
    num = 2.515517 + t * (0.802853 + t * 0.010328)
    den = 1.0 + t * (1.432788 + t * (0.189269 + t * 0.001308))
    mag = t - num / den
    z = jnp.where(u < 0.5, -mag, mag)      # ~N(0, 1)

    y = x + (z * SCALE + MEAN)
    if CLIP:
        y = jnp.clip(y, 0.0, 1.0)
    o_ref[...] = y


def _choose_layout(n):
    """Pick (lane_width, pad, rows, block_rows) for a flat array of n elems."""
    lane_w, pad = None, 0
    # Prefer the widest lane dimension that needs NO padding (lane-dense
    # stores without paying the jnp.pad / slice HBM copies).
    for w in (4096, 2048, 1024, 512, 256, 128):
        if n % (8 * w) == 0:
            lane_w = w
            break
    if lane_w is None:
        lane_w = 1024
        pad = (-n) % (8 * lane_w)
    rows = (n + pad) // lane_w
    # ~2 MiB f32 blocks; block_rows is a multiple of 8 and divides rows so all
    # grid steps are full tiles (safe on HW and in interpret mode).
    target = max(8, ((2 * 1024 * 1024) // (lane_w * 4) // 8) * 8)
    blk_r = min(rows, target)
    while rows % blk_r:
        blk_r -= 8
    return lane_w, pad, rows, blk_r


def _noise_2d(x2d, seed, blk_r, lane_w):
    rows = x2d.shape[0]
    n = rows * lane_w
    return pl.pallas_call(
        _noise_kernel,
        out_shape=jax.ShapeDtypeStruct((rows, lane_w), x2d.dtype),
        grid=(rows // blk_r,),
        in_specs=[
            pl.BlockSpec(memory_space=pltpu.SMEM),             # seed (scalar)
            pl.BlockSpec((blk_r, lane_w), lambda i: (i, 0)),   # x tile
        ],
        out_specs=pl.BlockSpec((blk_r, lane_w), lambda i: (i, 0)),
        compiler_params=pltpu.CompilerParams(
            dimension_semantics=("parallel",)),
        cost_estimate=pl.CostEstimate(
            flops=40 * n, transcendentals=2 * n, bytes_accessed=8 * n),
    )(seed, x2d)


@jax.jit
def noise_pallas(x, seed, flag):
    """x: float32 NCHW tensor. seed/flag: int32 arrays of shape (1,)."""
    orig_shape = x.shape
    n = x.size
    lane_w, pad, rows, blk_r = _choose_layout(n)

    def _apply(xin):
        flat = xin.reshape(-1)
        if pad:
            flat = jnp.pad(flat, (0, pad))
        x2d = flat.reshape(rows, lane_w)
        out2d = _noise_2d(x2d, seed, blk_r, lane_w)
        out = out2d.reshape(-1)
        if pad:
            out = out[:n]
        return out.reshape(orig_shape)

    # flag==0: skip the kernel entirely (op is HBM-bandwidth bound).
    # TODO(synk): the module's host-side `random.random() > p` coin flip is
    # hoisted to the caller-provided `flag` input (no in-graph host RNG).
    return jax.lax.cond(flag[0] != 0, _apply, lambda t: t, x)


if __name__ == "__main__":
    key = jax.random.PRNGKey(0)
    kx, kflag, kseed = jax.random.split(key, 3)

    # Small NCHW input consistent with an image-augmentation module.
    x = jax.random.uniform(kx, (2, 4, 16, 16), dtype=jnp.float32)

    # Deterministic seed for the in-kernel counter-based PRNG.
    seed = jnp.asarray(
        [jax.random.randint(kseed, (), 0, 2**31 - 1, dtype=jnp.int32)],
        dtype=jnp.int32)

    # Host-side analogue of `random.random() > p`: apply noise with prob p.
    u = jax.random.uniform(kflag, ())
    flag_random = jnp.asarray([(u <= P).astype(jnp.int32)], dtype=jnp.int32)

    # Exercise both branches deterministically, plus the random one.
    flag_on = jnp.ones((1,), jnp.int32)
    flag_off = jnp.zeros((1,), jnp.int32)

    out_on = jax.block_until_ready(noise_pallas(x, seed, flag_on))
    out_off = jax.block_until_ready(noise_pallas(x, seed, flag_off))
    out_rand = jax.block_until_ready(noise_pallas(x, seed, flag_random))

    assert out_on.shape == x.shape and out_on.dtype == x.dtype
    # Noise applied: result is clipped to [0, 1] and actually perturbed.
    assert bool(jnp.all(out_on >= 0.0)) and bool(jnp.all(out_on <= 1.0))
    assert not bool(jnp.allclose(out_on, x))
    # Noise skipped: exact passthrough.
    assert bool(jnp.array_equal(out_off, x))
    assert out_rand.shape == x.shape

    print("KERNEL_OK")
</pallas_src>

<mosaic_0001>
module attributes {stable_mosaic.version = 11 : i64} {
  func.func @_noise_kernel(%arg0: i32, %arg1: memref<1xi32, #tpu.memory_space<smem>>, %arg2: memref<8x256xf32, #tpu.memory_space<vmem>>, %arg3: memref<8x256xf32, #tpu.memory_space<vmem>>) attributes {dimension_semantics = [#tpu.dimension_semantics<parallel>], iteration_bounds = array<i64: 1>, scalar_prefetch = 0 : i64, scratch_operands = 0 : i64, tpu.core_type = #tpu.core_type<tc>, window_params = [{transform_indices = @transform_0, window_bounds = array<i64: 1>}, {transform_indices = @transform_1, window_bounds = array<i64: 8, 256>}, {transform_indices = @transform_2, window_bounds = array<i64: 8, 256>}]} {
    %c0 = arith.constant 0 : index
    %c0_0 = arith.constant 0 : index
    %0 = vector.load %arg2[%c0, %c0_0] : memref<8x256xf32, #tpu.memory_space<vmem>>, vector<8x256xf32>
    %1 = tpu.iota {dimensions = array<i32: 0>} : vector<8x256xi32>
    %2 = tpu.iota {dimensions = array<i32: 1>} : vector<8x256xi32>
    %c2048_i32 = arith.constant 2048 : i32
    %3 = arith.muli %arg0, %c2048_i32 : i32
    %c256_i32 = arith.constant 256 : i32
    %4 = vector.broadcast %c256_i32 : i32 to vector<8x256xi32>
    %5 = arith.muli %1, %4 : vector<8x256xi32>
    %6 = vector.broadcast %3 : i32 to vector<8x256xi32>
    %7 = arith.addi %6, %5 : vector<8x256xi32>
    %8 = arith.addi %7, %2 : vector<8x256xi32>
    %c0_1 = arith.constant 0 : index
    %9 = memref.load %arg1[%c0_1] : memref<1xi32, #tpu.memory_space<smem>>
    %c-1640531535_i32 = arith.constant -1640531535 : i32
    %10 = vector.broadcast %c-1640531535_i32 : i32 to vector<8x256xi32>
    %11 = arith.muli %8, %10 : vector<8x256xi32>
    %12 = vector.broadcast %9 : i32 to vector<8x256xi32>
    %13 = arith.addi %11, %12 : vector<8x256xi32>
    %c16_i32 = arith.constant 16 : i32
    %14 = vector.broadcast %c16_i32 : i32 to vector<8x256xi32>
    %15 = arith.shrui %13, %14 : vector<8x256xi32>
    %16 = arith.xori %13, %15 : vector<8x256xi32>
    %c-2048144789_i32 = arith.constant -2048144789 : i32
    %17 = vector.broadcast %c-2048144789_i32 : i32 to vector<8x256xi32>
    %18 = arith.muli %16, %17 : vector<8x256xi32>
    %c13_i32 = arith.constant 13 : i32
    %19 = vector.broadcast %c13_i32 : i32 to vector<8x256xi32>
    %20 = arith.shrui %18, %19 : vector<8x256xi32>
    %21 = arith.xori %18, %20 : vector<8x256xi32>
    %c-1028477387_i32 = arith.constant -1028477387 : i32
    %22 = vector.broadcast %c-1028477387_i32 : i32 to vector<8x256xi32>
    %23 = arith.muli %21, %22 : vector<8x256xi32>
    %c16_i32_2 = arith.constant 16 : i32
    %24 = vector.broadcast %c16_i32_2 : i32 to vector<8x256xi32>
    %25 = arith.shrui %23, %24 : vector<8x256xi32>
    %26 = arith.xori %23, %25 : vector<8x256xi32>
    %c8_i32 = arith.constant 8 : i32
    %27 = vector.broadcast %c8_i32 : i32 to vector<8x256xi32>
    %28 = arith.shrui %26, %27 : vector<8x256xi32>
    %29 = arith.sitofp %28 : vector<8x256xi32> to vector<8x256xf32>
    %cst = arith.constant 5.000000e-01 : f32
    %30 = vector.broadcast %cst : f32 to vector<8x256xf32>
    %31 = arith.addf %29, %30 : vector<8x256xf32>
    %cst_3 = arith.constant 5.96046448E-8 : f32
    %32 = vector.broadcast %cst_3 : f32 to vector<8x256xf32>
    %33 = arith.mulf %31, %32 : vector<8x256xf32>
    %cst_4 = arith.constant 1.000000e+00 : f32
    %34 = vector.broadcast %cst_4 : f32 to vector<8x256xf32>
    %35 = arith.subf %34, %33 : vector<8x256xf32>
    %36 = arith.minimumf %33, %35 : vector<8x256xf32>
    %37 = math.log %36 : vector<8x256xf32>
    %cst_5 = arith.constant -2.000000e+00 : f32
    %38 = vector.broadcast %cst_5 : f32 to vector<8x256xf32>
    %39 = arith.mulf %38, %37 : vector<8x256xf32>
    %40 = math.sqrt %39 : vector<8x256xf32>
    %cst_6 = arith.constant 1.032800e-02 : f32
    %41 = vector.broadcast %cst_6 : f32 to vector<8x256xf32>
    %42 = arith.mulf %40, %41 : vector<8x256xf32>
    %cst_7 = arith.constant 0.802852988 : f32
    %43 = vector.broadcast %cst_7 : f32 to vector<8x256xf32>
    %44 = arith.addf %43, %42 : vector<8x256xf32>
    %45 = arith.mulf %40, %44 : vector<8x256xf32>
    %cst_8 = arith.constant 2.515517 : f32
    %46 = vector.broadcast %cst_8 : f32 to vector<8x256xf32>
    %47 = arith.addf %46, %45 : vector<8x256xf32>
    %cst_9 = arith.constant 1.308000e-03 : f32
    %48 = vector.broadcast %cst_9 : f32 to vector<8x256xf32>
    %49 = arith.mulf %40, %48 : vector<8x256xf32>
    %cst_10 = arith.constant 1.892690e-01 : f32
    %50 = vector.broadcast %cst_10 : f32 to vector<8x256xf32>
    %51 = arith.addf %50, %49 : vector<8x256xf32>
    %52 = arith.mulf %40, %51 : vector<8x256xf32>
    %cst_11 = arith.constant 1.43278801 : f32
    %53 = vector.broadcast %cst_11 : f32 to vector<8x256xf32>
    %54 = arith.addf %53, %52 : vector<8x256xf32>
    %55 = arith.mulf %40, %54 : vector<8x256xf32>
    %cst_12 = arith.constant 1.000000e+00 : f32
    %56 = vector.broadcast %cst_12 : f32 to vector<8x256xf32>
    %57 = arith.addf %56, %55 : vector<8x256xf32>
    %58 = arith.divf %47, %57 : vector<8x256xf32>
    %59 = arith.subf %40, %58 : vector<8x256xf32>
    %cst_13 = arith.constant 5.000000e-01 : f32
    %60 = vector.broadcast %cst_13 : f32 to vector<8x256xf32>
    %61 = arith.cmpf olt, %33, %60 : vector<8x256xf32>
    %cst_14 = arith.constant 0.000000e+00 : f32
    %62 = vector.broadcast %cst_14 : f32 to vector<8x256xf32>
    %63 = arith.subf %62, %59 : vector<8x256xf32>
    %64 = arith.select %61, %63, %59 : vector<8x256xi1>, vector<8x256xf32>
    %cst_15 = arith.constant 3.000000e-01 : f32
    %65 = vector.broadcast %cst_15 : f32 to vector<8x256xf32>
    %66 = arith.mulf %64, %65 : vector<8x256xf32>
    %cst_16 = arith.constant 0.000000e+00 : f32
    %67 = vector.broadcast %cst_16 : f32 to vector<8x256xf32>
    %68 = arith.addf %66, %67 : vector<8x256xf32>
    %69 = arith.addf %0, %68 : vector<8x256xf32>
    %cst_17 = arith.constant 0.000000e+00 : f32
    %cst_18 = arith.constant 1.000000e+00 : f32
    %70 = vector.broadcast %cst_17 : f32 to vector<8x256xf32>
    %71 = arith.maximumf %70, %69 : vector<8x256xf32>
    %72 = vector.broadcast %cst_18 : f32 to vector<8x256xf32>
    %73 = arith.minimumf %72, %71 : vector<8x256xf32>
    %c0_19 = arith.constant 0 : index
    %c0_20 = arith.constant 0 : index
    %74 = vector.load %arg3[%c0_19, %c0_20] : memref<8x256xf32, #tpu.memory_space<vmem>>, vector<8x256xf32>
    tpu.vector_store %arg3[%c0_19, %c0_20], %73 {strides = array<i32>} : memref<8x256xf32, #tpu.memory_space<vmem>>, vector<8x256xf32>,
    return
  }
  func.func @transform_0(%arg0: i32) -> i32 {
    %c0_i32 = arith.constant 0 : i32
    %c0_i32_0 = arith.constant 0 : i32
    return %c0_i32 : i32
  }
  func.func @transform_1(%arg0: i32) -> (i32, i32) {
    %c0_i32 = arith.constant 0 : i32
    %c0_i32_0 = arith.constant 0 : i32
    return %arg0, %c0_i32 : i32, i32
  }
  func.func @transform_2(%arg0: i32) -> (i32, i32) {
    %c0_i32 = arith.constant 0 : i32
    %c0_i32_0 = arith.constant 0 : i32
    return %arg0, %c0_i32 : i32, i32
  }
}

</mosaic_0001>

<llo_original>
// kernel: branch_1_fun.1
$region0: #{branch_1_fun.1}
  #allocation0 [shape = 'u32[]', space=smem, size = 0x4, offset = 0x4, fixed_abs, tag = 'smem constant byte address 0x4 - core index']
  #allocation1 [shape = 'u32[144,128]{1,0:T(1,128)}', space=vmem, size = 0x12000, scoped, tag = 'internal scratch']
  #allocation2 [shape = 's32[1]{0:T(128)S(6)}', space=smem, size = 0x200, scoped, tag = 'scoped memory for branch_1_fun.1']
  %s0 = inlined_call_operand.<no memory space> [shape: s32[1], index: 0, kind: input, shape index: {}]
  %s1 = inlined_call_operand.vmem [shape: f32[8,256], index: 1, kind: input, shape index: {}]
  %s2 = inlined_call_operand.vmem [shape: f32[8,256], index: 2, kind: output, shape index: {}]
  %s3 = sld [smem:[#allocation0]]
  $region18: #{branch_1_fun.1} parent=0
    _
  %s5 = ssub.s32 1, %s3
  %s6 = scalar_select 0, %s5, %s3
  %7 = sst [smem:[#allocation2]] %s0
  // Predicated region
  $region2: #{branch_1_fun.1} parent=0 // pred_check
    _
  $region3: #{branch_1_fun.1} parent=0 // pred_check_branch
    %9 = sbr.rel (0) target = $region5
  $region4: #{branch_1_fun.1} parent=0 // pred_region
    _
  $region5: #{branch_1_fun.1} parent=0 // pred_fallthru
    _
  // Predicated region
  $region6: #{branch_1_fun.1} parent=0 // pred_check
    _
  $region7: #{branch_1_fun.1} parent=0 // pred_check_branch
    %11 = sbr.rel (0) target = $region9
  $region8: #{branch_1_fun.1} parent=0 // pred_region
    _
  $region9: #{branch_1_fun.1} parent=0 // pred_fallthru
    _
  %v12 = vld [vmem:[%s1] sm:$0xff]
  %v13 = vld [vmem:[%s1 + $0x8] sm:$0xff]
  %v14 = vlaneseq
  %v15 = vshrl.u32 %v14, 7
  %v16 = vlaneseq
  %v17 = vand.u32 %v16, 127
  %v18 = vadd.s32 %v17, 128
  %s19 = smul.u32 0, 2048
  %v20 = vmul.u32 %v15, 256
  %v21 = vstv %s19
  %v22 = vadd.s32 %v21, %v20
  %v23 = vadd.s32 %v22, %v17
  %v24 = vadd.s32 %v22, %v18
  %s25 = sld [smem:[#allocation2]]
  %v26 = vmul.u32 %v23, 2654435761
  %v27 = vmul.u32 %v24, 2654435761
  %v28 = vstv %s25
  %v29 = vadd.s32 %v26, %v28
  %v30 = vadd.s32 %v27, %v28
  %v31 = vshrl.u32 %v29, 16
  %v32 = vshrl.u32 %v30, 16
  %v33 = vxor.u32 %v29, %v31
  %v34 = vxor.u32 %v30, %v32
  %v35 = vmul.u32 %v33, 2246822507
  %v36 = vmul.u32 %v34, 2246822507
  %v37 = vshrl.u32 %v35, 13
  %v38 = vshrl.u32 %v36, 13
  %v39 = vxor.u32 %v35, %v37
  %v40 = vxor.u32 %v36, %v38
  %v41 = vmul.u32 %v39, 3266489909
  %v42 = vmul.u32 %v40, 3266489909
  %v43 = vshrl.u32 %v41, 16
  %v44 = vshrl.u32 %v42, 16
  %v45 = vxor.u32 %v41, %v43
  %v46 = vxor.u32 %v42, %v44
  %v47 = vshrl.u32 %v45, 8
  %v48 = vshrl.u32 %v46, 8
  %v49 = vcvt.s32.f32 %v47
  %v50 = vcvt.s32.f32 %v48
  %v51 = vadd.f32 %v49, 0.5
  %v52 = vadd.f32 %v50, 0.5
  %v53 = vmul.f32 %v51, 5.9604645e-08
  %v54 = vmul.f32 %v52, 5.9604645e-08
  %v55 = vsub.f32 1.0, %v53
  %v56 = vsub.f32 1.0, %v54
  %v57 = vmin.f32 %v53, %v55
  %v58 = vmin.f32 %v54, %v56
  %v59 = vlog2.pop %v57
  %v60 = vmul.f32 %v59, 0.6931472
  %v61 = vlog2.pop %v58
  %v62 = vmul.f32 %v61, 0.6931472
  %v63 = vmul.f32 %v60, -2.0
  %v64 = vmul.f32 %v62, -2.0
  %v65 = vrsqrt.pop %v63
  %v66 = vmul.f32 %v63, %v65
  %vm67 = vcmp.eq.f32.partialorder %v63, inf
  %v68 = vsel %vm67, %v63, %v66
  %vm69 = vcmp.eq.f32.partialorder %v63, 0.0
  %v70 = vand.u32 %v63, 2147483648
  %v71 = vsel %vm69, %v70, %v68
  %v72 = vrsqrt.pop %v64
  %v73 = vmul.f32 %v64, %v72
  %vm74 = vcmp.eq.f32.partialorder %v64, inf
  %v75 = vsel %vm74, %v64, %v73
  %vm76 = vcmp.eq.f32.partialorder %v64, 0.0
  %v77 = vand.u32 %v64, 2147483648
  %v78 = vsel %vm76, %v77, %v75
  %v79 = vmul.f32 %v71, 0.010328
  %v80 = vmul.f32 %v78, 0.010328
  %v81 = vadd.f32 %v79, 0.802853
  %v82 = vadd.f32 %v80, 0.802853
  %v83 = vmul.f32 %v71, %v81
  %v84 = vmul.f32 %v78, %v82
  %v85 = vadd.f32 %v83, 2.515517
  %v86 = vadd.f32 %v84, 2.515517
  %v87 = vmul.f32 %v71, 0.001308
  %v88 = vmul.f32 %v78, 0.001308
  %v89 = vadd.f32 %v87, 0.189269
  %v90 = vadd.f32 %v88, 0.189269
  %v91 = vmul.f32 %v71, %v89
  %v92 = vmul.f32 %v78, %v90
  %v93 = vadd.f32 %v91, 1.432788
  %v94 = vadd.f32 %v92, 1.432788
  %v95 = vmul.f32 %v71, %v93
  %v96 = vmul.f32 %v78, %v94
  %v97 = vadd.f32 %v95, 1.0
  %v98 = vadd.f32 %v96, 1.0
  %v99 = vrcp.pop %v97
  %v100 = vmul.f32 %v85, %v99
  %v101 = vrcp.pop %v98
  %v102 = vmul.f32 %v86, %v101
  %v103 = vsub.f32 %v71, %v100
  %v104 = vsub.f32 %v78, %v102
  %vm105 = vcmp.lt.f32.partialorder %v53, 0.5
  %vm106 = vcmp.lt.f32.partialorder %v54, 0.5
  %v107 = vsub.f32 0.0, %v103
  %v108 = vsub.f32 0.0, %v104
  %v109 = vsel %vm105, %v107, %v103
  %v110 = vsel %vm106, %v108, %v104
  %v111 = vmul.f32 %v109, 0.3
  %v112 = vmul.f32 %v110, 0.3
  %v113 = vadd.f32 %v111, 0.0
  %v114 = vadd.f32 %v112, 0.0
  %v115 = vadd.f32 %v12, %v113
  %v116 = vadd.f32 %v13, %v114
  %v117 = vmax.f32 %v115, 0.0
  %v118 = vmax.f32 %v116, 0.0
  %v119 = vmin.f32 %v117, 1.0
  %v120 = vmin.f32 %v118, 1.0
  %121 = vst [vmem:[%s2] sm:$0xff] %v119
  %122 = vst [vmem:[%s2 + $0x8] sm:$0xff] %v120
  // Predicated region
  $region10: #{branch_1_fun.1} parent=0 // pred_check
    _
  $region11: #{branch_1_fun.1} parent=0 // pred_check_branch
    %124 = sbr.rel (0) target = $region13
  $region12: #{branch_1_fun.1} parent=0 // pred_region
    _
  $region13: #{branch_1_fun.1} parent=0 // pred_fallthru
    _
  // Predicated region
  $region14: #{branch_1_fun.1} parent=0 // pred_check
    _
  $region15: #{branch_1_fun.1} parent=0 // pred_check_branch
    %126 = sbr.rel (0) target = $region17
  $region16: #{branch_1_fun.1} parent=0 // pred_region
    _
  $region17: #{branch_1_fun.1} parent=0 // pred_fallthru
    _

</llo_original>
